<compile_context>
chip_gen: v7x
topology: tpu7x:2x2x1
jax: 0.10.0
libtpu: 0.0.40
codegen_flags: <defaults>
</compile_context>

<pallas_src>
import jax
import jax.numpy as jnp
from jax import lax
from jax.experimental import pallas as pl
from jax.experimental.pallas import tpu as pltpu

NEG_SLOPE = 0.1
BN_EPS = 1e-5
NUM_LAYERS = 8


def _leaky(y):
    return jnp.where(y >= 0, y, NEG_SLOPE * y)


def _round_up(x, m):
    return ((x + m - 1) // m) * m


# ---------------------------------------------------------------------------
# pltpu.roll convention probe (tiny one-off kernel, memoized; startup-only cost)
# ---------------------------------------------------------------------------
_ROLL_MATCHES_JNP = None


def _roll_matches_jnp():
    """True iff pltpu.roll(x, s)[i] == x[(i - s) % n] (jnp.roll semantics)."""
    global _ROLL_MATCHES_JNP
    if _ROLL_MATCHES_JNP is None:
        def probe(x_ref, o_ref):
            o_ref[...] = pltpu.roll(x_ref[...], 1, axis=1)

        x = jnp.broadcast_to(jnp.arange(128, dtype=jnp.float32), (8, 128))
        y = pl.pallas_call(
            probe, out_shape=jax.ShapeDtypeStruct((8, 128), jnp.float32))(x)
        _ROLL_MATCHES_JNP = bool(float(y[0, 0]) == 127.0)
    return _ROLL_MATCHES_JNP


# ---------------------------------------------------------------------------
# Fused SCVPBlock kernel
# ---------------------------------------------------------------------------
def _make_scvp_kernel(D, H, W, Cr, K, K_pad, P, num_layers, residual,
                      roll_is_jnp):
    Dp, Hp, Wp = D + 2, H + 2, W + 2
    shifts = []
    for kd in range(3):
        for kh in range(3):
            for kw in range(3):
                delta = (kd - 1) * Hp * Wp + (kh - 1) * Wp + (kw - 1)
                s = (-delta) if roll_is_jnp else delta
                shifts.append(s % P)
    half = num_layers // 2

    def kernel(x_ref, w_ref, b_ref, mask_ref, o_ref, idn_ref, patch_ref):
        # x_ref:     (1, Cr, P)      f32  input (channels-first, padded flat volume)
        # w_ref:     (L, Cr, K_pad)  bf16 packed weights (BN scale folded in)
        # b_ref:     (L, Cr, 1)      f32  folded BN bias
        # mask_ref:  (1, P)          f32  1.0 at interior voxels, 0.0 at halo/pad
        # o_ref:     (1, Cr, P)      f32  output block; doubles as the resident
        #                                 working activation buffer
        # idn_ref:   (Cr, P)         VMEM f32   residual identity (conv1 output)
        # patch_ref: (K_pad, P)      VMEM bf16  im2col patch matrix

        # Zero the patch pad rows once per grid step (sublane-tile-aligned slab;
        # weight columns there are zero but 0 * uninitialized-NaN would poison
        # the accumulation).  Rows below K get overwritten every layer anyway.
        if K_pad > K:
            zlo = (K // 16) * 16
            patch_ref[pl.ds(zlo, K_pad - zlo), :] = jnp.zeros(
                (K_pad - zlo, P), jnp.bfloat16)

        # Output block is the working activation buffer (no act scratch).
        o_ref[0] = x_ref[0]

        m = mask_ref[...]                    # (1, P)
        mask_bool = m > 0.5
        mask_neg = NEG_SLOPE * m             # 0.1 at interior, 0.0 at halo/pad

        def layer_body(layer, carry):
            # One small f32->bf16 cast of the activation (Cr*P elements)
            # instead of casting the full (K_pad, P) patch at the dot.
            ab = o_ref[0].astype(jnp.bfloat16)              # (Cr, P) bf16
            # im2col: 27 taps are static lane rotations (XLU) of the padded
            # flat volume, stored into the bf16 patch (half the f32 traffic).
            for t, s in enumerate(shifts):                  # static 27-tap unroll
                patch_ref[pl.ds(t * Cr, Cr), :] = pltpu.roll(ab, s, axis=1)
            # One K-packed bf16 MXU matmul per layer, f32 accumulation.
            r = jnp.dot(w_ref[layer], patch_ref[...],
                        preferred_element_type=jnp.float32)  # (Cr, P)
            y = r + b_ref[layer]
            # LeakyReLU with the interior mask folded into the select:
            # interior: y>=0 -> y, y<0 -> 0.1*y ; halo/tail lanes -> 0.
            y = jnp.where(jnp.logical_and(mask_bool, y >= 0.0), y, mask_neg * y)
            o_ref[0] = y
            if residual:
                @pl.when(layer == half - 1)
                def _():
                    idn_ref[...] = y                         # conv1 output
            return carry

        lax.fori_loop(0, num_layers, layer_body, 0)

        out = o_ref[0]
        if residual:
            out = out + idn_ref[...]
        o_ref[0] = _leaky(out)

    return kernel


# ---------------------------------------------------------------------------
# Host-side packing helpers
# ---------------------------------------------------------------------------
def init_params(key, in_channels, out_channels):
    """8 CNNBlocks (conv1: 4, conv2: 4). BN folded to scale/bias (inference)."""
    params = []
    cin = in_channels
    for _ in range(NUM_LAYERS):
        key, kw, kg, kb = jax.random.split(key, 4)
        fan_in = cin * 27
        w = jax.random.normal(kw, (3, 3, 3, cin, out_channels), jnp.float32)
        w = w / jnp.sqrt(jnp.float32(fan_in))
        gamma = 1.0 + 0.1 * jax.random.normal(kg, (out_channels,), jnp.float32)
        beta = 0.1 * jax.random.normal(kb, (out_channels,), jnp.float32)
        running_mean = jnp.zeros((out_channels,), jnp.float32)
        running_var = jnp.ones((out_channels,), jnp.float32)
        scale = gamma / jnp.sqrt(running_var + BN_EPS)
        bias = beta - running_mean * scale
        params.append(dict(w=w, scale=scale, bias=bias))
        cin = out_channels
    return params


def _pack_params(params, Cr, K_pad):
    """Fold BN scale into conv weights; pack to (L, Cr, K_pad) bf16 + bias."""
    ws, bs = [], []
    for p in params:
        w = p["w"]                                   # (3,3,3,cin,cout) DHWIO
        cin, cout = w.shape[3], w.shape[4]
        wf = w * p["scale"]                          # fold BN scale (exact)
        wf = jnp.pad(wf, ((0, 0), (0, 0), (0, 0),
                          (0, Cr - cin), (0, Cr - cout)))
        # (co, kd, kh, kw, ci) -> rows=co, K index = tap*Cr + ci
        wp = jnp.transpose(wf, (4, 0, 1, 2, 3)).reshape(Cr, 27 * Cr)
        wp = jnp.pad(wp, ((0, 0), (0, K_pad - 27 * Cr)))
        ws.append(wp.astype(jnp.bfloat16))
        bs.append(jnp.pad(p["bias"], (0, Cr - cout)).reshape(Cr, 1))
    return jnp.stack(ws), jnp.stack(bs)


def _interior_mask(D, H, W, P):
    Dp, Hp, Wp = D + 2, H + 2, W + 2
    d = (jnp.arange(Dp) >= 1) & (jnp.arange(Dp) <= D)
    h = (jnp.arange(Hp) >= 1) & (jnp.arange(Hp) <= H)
    w = (jnp.arange(Wp) >= 1) & (jnp.arange(Wp) <= W)
    m = (d[:, None, None] & h[None, :, None] & w[None, None, :]).reshape(-1)
    m = jnp.pad(m.astype(jnp.float32), (0, P - Dp * Hp * Wp))
    return m.reshape(1, P)


def _embed_input(x, Cr, P):
    """NCDHW -> (N, Cr, P): zero halo + channel pad, flattened, lane-padded."""
    N, Cin, D, H, W = x.shape
    Dp, Hp, Wp = D + 2, H + 2, W + 2
    xp = jnp.zeros((N, Cr, Dp, Hp, Wp), x.dtype)
    xp = xp.at[:, :Cin, 1:1 + D, 1:1 + H, 1:1 + W].set(x)
    xp = xp.reshape(N, Cr, Dp * Hp * Wp)
    return jnp.pad(xp, ((0, 0), (0, 0), (0, P - Dp * Hp * Wp)))


# ---------------------------------------------------------------------------
# Forward pass
# ---------------------------------------------------------------------------
def scvp_forward(x_ncdhw, params, residual=True):
    """SCVPBlock.forward.  Input/output layout: NCDHW (PyTorch convention)."""
    N, Cin, D, H, W = x_ncdhw.shape
    Cout = params[0]["w"].shape[-1]
    L = len(params)
    # f32 activations: pad channels to the sublane minimum (8) only — the MXU
    # has huge slack at these channel counts, never pad toward MXU width.
    Cr = _round_up(max(Cin, Cout), 8)
    Dp, Hp, Wp = D + 2, H + 2, W + 2
    P = _round_up(Dp * Hp * Wp, 128)
    K = 27 * Cr
    K_pad = _round_up(K, 16)     # bf16 patch: minimal sublane alignment (224)

    # roll-based im2col validity: every tap of every interior voxel stays
    # inside the contiguous padded volume [0, Dp*Hp*Wp), so the mod-P lane
    # rotation never wraps into live lanes (the tail [Dp*Hp*Wp, P) stays zero
    # and is re-masked every layer).  Holds only for halo=1 + contiguous
    # flattening; keep these asserts if the flat layout ever changes.
    assert P >= Dp * Hp * Wp
    assert Hp * Wp + Wp + 1 < Dp * Hp * Wp

    w_packed, b_packed = _pack_params(params, Cr, K_pad)
    mask = _interior_mask(D, H, W, P)
    xp = _embed_input(x_ncdhw, Cr, P)

    kernel = _make_scvp_kernel(D, H, W, Cr, K, K_pad, P, L, residual,
                               _roll_matches_jnp())

    out = pl.pallas_call(
        kernel,
        out_shape=jax.ShapeDtypeStruct((N, Cr, P), jnp.float32),
        grid_spec=pltpu.PrefetchScalarGridSpec(
            num_scalar_prefetch=0,
            grid=(N,),
            in_specs=[
                pl.BlockSpec((1, Cr, P), lambda n: (n, 0, 0)),
                pl.BlockSpec((L, Cr, K_pad), lambda n: (0, 0, 0)),
                pl.BlockSpec((L, Cr, 1), lambda n: (0, 0, 0)),
                pl.BlockSpec((1, P), lambda n: (0, 0)),
            ],
            out_specs=pl.BlockSpec((1, Cr, P), lambda n: (n, 0, 0)),
            scratch_shapes=[
                pltpu.VMEM((Cr, P), jnp.float32),      # residual identity
                pltpu.VMEM((K_pad, P), jnp.bfloat16),  # im2col patch (bf16)
            ],
        ),
        compiler_params=pltpu.CompilerParams(
            dimension_semantics=("parallel",),
        ),
    )(xp, w_packed, b_packed, mask)

    # (N, Cr, P) -> NCDHW interior (no transpose: already channels-first)
    out = out[:, :Cout, :Dp * Hp * Wp].reshape(N, Cout, Dp, Hp, Wp)
    return out[:, :, 1:1 + D, 1:1 + H, 1:1 + W]


# ---------------------------------------------------------------------------
# Pure-JAX reference (for correctness check)
# ---------------------------------------------------------------------------
def ref_forward(x_ncdhw, params, residual=True):
    x = jnp.transpose(x_ncdhw, (0, 2, 3, 4, 1))

    def block(x, p):
        y = lax.conv_general_dilated(
            x, p["w"], window_strides=(1, 1, 1), padding="SAME",
            dimension_numbers=("NDHWC", "DHWIO", "NDHWC"),
            precision=lax.Precision.HIGHEST)
        y = y * p["scale"] + p["bias"]
        return _leaky(y)

    for p in params[:4]:
        x = block(x, p)
    identity = x
    for p in params[4:]:
        x = block(x, p)
    if residual:
        x = x + identity
    x = _leaky(x)
    return jnp.transpose(x, (0, 4, 1, 2, 3))


# ---------------------------------------------------------------------------
if __name__ == "__main__":
    key = jax.random.PRNGKey(0)
    kx, kp = jax.random.split(key)

    N, Cin, Cout, D, H, W = 2, 4, 8, 8, 8, 8
    x = jax.random.normal(kx, (N, Cin, D, H, W), jnp.float32)
    params = init_params(kp, Cin, Cout)

    _roll_matches_jnp()  # resolve rotate convention once, outside jit

    fwd = jax.jit(lambda xx: scvp_forward(xx, params, residual=True))
    out = jax.block_until_ready(fwd(x))
    assert out.shape == (N, Cout, D, H, W), out.shape

    ref = ref_forward(x, params, residual=True)
    err = float(jnp.max(jnp.abs(out - ref)))
    scale = float(jnp.max(jnp.abs(ref)))
    tol = 0.05 * scale + 5e-3  # bf16 MXU inputs across 8 chained conv layers
    if err > tol:
        raise SystemExit(f"mismatch vs reference: max abs err = {err} (tol {tol})")

    print("KERNEL_OK")
</pallas_src>

<mosaic_0001>
module attributes {stable_mosaic.version = 11 : i64} {
  func.func @probe(%arg0: memref<8x128xf32, #tpu.memory_space<vmem>>, %arg1: memref<8x128xf32, #tpu.memory_space<vmem>>) attributes {dimension_semantics = [], scalar_prefetch = 0 : i64, scratch_operands = 0 : i64, tpu.core_type = #tpu.core_type<tc>} {
    %c0 = arith.constant 0 : index
    %c0_0 = arith.constant 0 : index
    %0 = vector.load %arg0[%c0, %c0_0] : memref<8x128xf32, #tpu.memory_space<vmem>>, vector<8x128xf32>
    %c1_i32 = arith.constant 1 : i32
    %1 = tpu.dynamic_rotate %0 by %c1_i32 dim 1 : vector<8x128xf32>, i32 -> vector<8x128xf32>
    %c0_1 = arith.constant 0 : index
    %c0_2 = arith.constant 0 : index
    %2 = vector.load %arg1[%c0_1, %c0_2] : memref<8x128xf32, #tpu.memory_space<vmem>>, vector<8x128xf32>
    tpu.vector_store %arg1[%c0_1, %c0_2], %1 {strides = array<i32>} : memref<8x128xf32, #tpu.memory_space<vmem>>, vector<8x128xf32>,
    return
  }
}

</mosaic_0001>

<llo_original>
// kernel: tpu_custom_call.1
$region0: #{tpu_custom_call.1}
  #allocation0 [shape = 'u32[]', space=smem, size = 0x4, offset = 0x4, fixed_abs, tag = 'smem constant byte address 0x4 - core index']
  #allocation1 [shape = 'u32[144,128]{1,0:T(1,128)}', space=vmem, size = 0x12000, scoped, tag = 'internal scratch']
  %s0 = inlined_call_operand.hbm [shape: f32[8,128], index: 0, kind: input, shape index: {}]
  %s1 = inlined_call_operand.hbm [shape: f32[8,128], index: 1, kind: output, shape index: {}]
  %s2 = sld [smem:[#allocation0]]
  $region18: #{tpu_custom_call.1} parent=0
    _
  %s4 = ssub.s32 1, %s2
  %s5 = scalar_select 0, %s4, %s2
  $region1: #{tpu_custom_call.1} parent=0
    #allocation2 [shape = 'u8[4096]{0}', space=vmem, size = 0x1000, scoped, tag = 'input window, operand 0, single buffered']
    #allocation3 [shape = 's32[1]{0}', space=sflag, size = 0x4, scoped, tag = 'scoped memory for tpu_custom_call.1']
    #allocation4 [shape = 's32[1]{0}', space=sflag, size = 0x4, scoped, tag = 'scoped memory for tpu_custom_call.1']
    #allocation5 [shape = 'u8[4096]{0}', space=vmem, size = 0x1000, scoped, tag = 'output window, operand 0, single buffered']
    %6 = vsyncpa [#allocation3], 0
    %7 = vsyncpa [#allocation4], 0
    // Predicated region
    $region2: #{tpu_custom_call.1} parent=1 // pred_check
      _
    $region3: #{tpu_custom_call.1} parent=1 // pred_check_branch
      %9 = sbr.rel (0) target = $region5
    $region4: #{tpu_custom_call.1} parent=1 // pred_region
      %s11 = ssub.s32 128, 128
      %12 = vsyncadd [#allocation3], %s11
      %s14 = sshll.u32 [#allocation2], 4
      %s15 = int_to_ptr.vmem [resolvable:$true] %s14
      %17 = dma.hbm_to_vmem [thread:$0]  %s0, 128, %s15, [#allocation3]
    $region5: #{tpu_custom_call.1} parent=1 // pred_fallthru
      _
    // Predicated region
    $region6: #{tpu_custom_call.1} parent=1 // pred_check
      _
    $region7: #{tpu_custom_call.1} parent=1 // pred_check_branch
      %19 = sbr.rel (0) target = $region9
    $region8: #{tpu_custom_call.1} parent=1 // pred_region
      %20 = dma.done [#allocation3], 128
    $region9: #{tpu_custom_call.1} parent=1 // pred_fallthru
      _
    %v21 = vld [vmem:[#allocation2] sm:$0xff]
    %22 = vrot.lane.b32.xlu0 %v21, 1
    %v23 = vpop.permute.xlu0 %22
    %24 = vst [vmem:[#allocation5] sm:$0xff] %v23
    // Predicated region
    $region10: #{tpu_custom_call.1} parent=1 // pred_check
      _
    $region11: #{tpu_custom_call.1} parent=1 // pred_check_branch
      %26 = sbr.rel (0) target = $region13
    $region12: #{tpu_custom_call.1} parent=1 // pred_region
      %s28 = ssub.s32 128, 128
      %29 = vsyncadd [#allocation4], %s28
      %s31 = sshll.u32 [#allocation5], 4
      %s32 = int_to_ptr.vmem [resolvable:$true] %s31
      %34 = dma.vmem_to_hbm [thread:$0]  %s32, 128, %s1, [#allocation4]
    $region13: #{tpu_custom_call.1} parent=1 // pred_fallthru
      _
    // Predicated region
    $region14: #{tpu_custom_call.1} parent=1 // pred_check
      _
    $region15: #{tpu_custom_call.1} parent=1 // pred_check_branch
      %36 = sbr.rel (0) target = $region17
    $region16: #{tpu_custom_call.1} parent=1 // pred_region
      %37 = dma.done [#allocation4], 128
    $region17: #{tpu_custom_call.1} parent=1 // pred_fallthru
      _
    %38 = vsyncpa [#allocation3], 1
    %39 = vsyncpa [#allocation4], 1

</llo_original>
